<compile_context>
chip_gen: v7x
topology: tpu7x:2x2x1
jax: 0.10.0
libtpu: 0.0.40
codegen_flags: <defaults>
</compile_context>

<pallas_src>
import functools

import jax
import jax.numpy as jnp
from jax.experimental import pallas as pl
from jax.experimental.pallas import tpu as pltpu


def _size_slice_kernel(x_ref, o_ref, *, start: int, out_len: int):
    """Copy the contiguous slice x[start : start+out_len] into the output.

    x_ref: (1, n)       int32 VMEM tile (full shape vector).
    o_ref: (1, out_len) int32 VMEM tile.
    `start`/`out_len` are static Python ints (the module's start_dim is a
    compile-time attribute), so this lowers to a plain static lane slice.
    """
    o_ref[...] = x_ref[:, start:start + out_len]


def pallas_size(x, start_dim=None):
    """JAX/Pallas equivalent of `Size.forward`.

    x         : 1-D integer array of dimension sizes (a "shape tensor").
    start_dim : same semantics as the torch module (falsy -> keep everything).

    Returns the int32 1-D array `x[start_dim:]`, computed on-device by a
    Pallas kernel.  Use `to_size_tuple` on the result (outside jit) for the
    exact `torch.Size` analogue.
    """
    x = jnp.asarray(x, dtype=jnp.int32)
    if x.ndim != 1:
        raise ValueError(f"Size expects a 1-D shape vector, got shape {x.shape}")
    n = int(x.shape[0])

    # Mirror the torch module's truthiness check (`if self.start_dim:`);
    # Python range slicing also handles negative start_dim like torch does.
    sel = range(n)[start_dim:] if start_dim else range(n)
    out_len = len(sel)
    if out_len == 0:
        # torch.Size(()) analogue -- nothing for a kernel to do.
        return jnp.zeros((0,), dtype=jnp.int32)
    start = sel[0]

    x2 = x.reshape(1, n)  # lane-dense 2-D layout for the TPU kernel

    out2 = pl.pallas_call(
        functools.partial(_size_slice_kernel, start=start, out_len=out_len),
        out_shape=jax.ShapeDtypeStruct((1, out_len), jnp.int32),
        in_specs=[pl.BlockSpec(memory_space=pltpu.MemorySpace.VMEM)],
        out_specs=pl.BlockSpec(memory_space=pltpu.MemorySpace.VMEM),
    )(x2)
    return out2.reshape(out_len)


def to_size_tuple(size_vec):
    """Host-side conversion of the kernel output to a Python tuple (torch.Size)."""
    # TODO(synk): torch.Size is a host-side tuple of Python ints; there is no
    # Pallas/traced equivalent of returning it, so this conversion lives
    # outside any jit region.
    return tuple(int(v) for v in jax.device_get(size_vec))


class Size:
    """Pallas/JAX port of the onnx2torch `Size` module."""

    def __init__(self, start_dim=None):
        self.start_dim = start_dim

    def __call__(self, x):
        return pallas_size(x, self.start_dim)

    @classmethod
    def from_onnx(cls, start_dim=None):
        return cls(start_dim)


if __name__ == "__main__":
    key = jax.random.PRNGKey(0)
    # Small activation-like tensor; the ONNX `Size` node consumes its shape
    # vector (what a preceding Shape op produces).
    x_tensor = jax.random.normal(key, (2, 4, 16, 16), dtype=jnp.float32)
    shape_vec = jnp.asarray(x_tensor.shape, dtype=jnp.int32)  # (4,) int32

    # start_dim=None -> full size.
    full = jax.block_until_ready(Size.from_onnx(None)(shape_vec))
    # start_dim=2 -> trailing (spatial) dims only.
    tail = jax.block_until_ready(Size.from_onnx(2)(shape_vec))

    assert full.shape == (4,) and full.dtype == jnp.int32, (full.shape, full.dtype)
    assert tail.shape == (2,) and tail.dtype == jnp.int32, (tail.shape, tail.dtype)
    assert to_size_tuple(full) == (2, 4, 16, 16), to_size_tuple(full)
    assert to_size_tuple(tail) == (16, 16), to_size_tuple(tail)

    print("KERNEL_OK")
</pallas_src>

<mosaic_0001>
module attributes {stable_mosaic.version = 11 : i64} {
  func.func @_size_slice_kernel(%arg0: memref<1x4xi32, #tpu.memory_space<vmem>>, %arg1: memref<1x4xi32, #tpu.memory_space<vmem>>) attributes {dimension_semantics = [], scalar_prefetch = 0 : i64, scratch_operands = 0 : i64, tpu.core_type = #tpu.core_type<tc>} {
    %c0 = arith.constant 0 : index
    %c0_0 = arith.constant 0 : index
    %0 = vector.load %arg0[%c0, %c0_0] : memref<1x4xi32, #tpu.memory_space<vmem>>, vector<1x4xi32>
    %c0_1 = arith.constant 0 : index
    %c0_2 = arith.constant 0 : index
    %1 = vector.load %arg1[%c0_1, %c0_2] : memref<1x4xi32, #tpu.memory_space<vmem>>, vector<1x4xi32>
    tpu.vector_store %arg1[%c0_1, %c0_2], %0 {strides = array<i32>} : memref<1x4xi32, #tpu.memory_space<vmem>>, vector<1x4xi32>,
    return
  }
}

</mosaic_0001>

<llo_original>
// kernel: tpu_custom_call.1
$region0: #{tpu_custom_call.1}
  #allocation0 [shape = 'u32[]', space=smem, size = 0x4, offset = 0x4, fixed_abs, tag = 'smem constant byte address 0x4 - core index']
  #allocation1 [shape = 'u32[144,128]{1,0:T(1,128)}', space=vmem, size = 0x12000, scoped, tag = 'internal scratch']
  %s0 = inlined_call_operand.hbm [shape: s32[1,4], index: 0, kind: input, shape index: {}]
  %s1 = inlined_call_operand.hbm [shape: s32[1,4], index: 1, kind: output, shape index: {}]
  %s2 = sld [smem:[#allocation0]]
  $region18: #{tpu_custom_call.1} parent=0
    _
  %s4 = ssub.s32 1, %s2
  %s5 = scalar_select 0, %s4, %s2
  $region1: #{tpu_custom_call.1} parent=0
    #allocation2 [shape = 'u8[512]{0}', space=vmem, size = 0x400, scoped, tag = 'input window, operand 0, single buffered']
    #allocation3 [shape = 's32[1]{0}', space=sflag, size = 0x4, scoped, tag = 'scoped memory for tpu_custom_call.1']
    #allocation4 [shape = 's32[1]{0}', space=sflag, size = 0x4, scoped, tag = 'scoped memory for tpu_custom_call.1']
    #allocation5 [shape = 'u8[512]{0}', space=vmem, size = 0x400, scoped, tag = 'output window, operand 0, single buffered']
    %6 = vsyncpa [#allocation3], 0
    %7 = vsyncpa [#allocation4], 0
    // Predicated region
    $region2: #{tpu_custom_call.1} parent=1 // pred_check
      _
    $region3: #{tpu_custom_call.1} parent=1 // pred_check_branch
      %9 = sbr.rel (0) target = $region5
    $region4: #{tpu_custom_call.1} parent=1 // pred_region
      %s11 = ssub.s32 16, 16
      %12 = vsyncadd [#allocation3], %s11
      %s14 = sshll.u32 [#allocation2], 4
      %s15 = int_to_ptr.vmem [resolvable:$true] %s14
      %17 = dma.hbm_to_vmem [thread:$0]  %s0, 16, %s15, [#allocation3]
    $region5: #{tpu_custom_call.1} parent=1 // pred_fallthru
      _
    // Predicated region
    $region6: #{tpu_custom_call.1} parent=1 // pred_check
      _
    $region7: #{tpu_custom_call.1} parent=1 // pred_check_branch
      %19 = sbr.rel (0) target = $region9
    $region8: #{tpu_custom_call.1} parent=1 // pred_region
      %20 = dma.done [#allocation3], 16
    $region9: #{tpu_custom_call.1} parent=1 // pred_fallthru
      _
    %v21 = vld [vmem:[#allocation2] sm:$0x1]
    %vm22 = vcmask 24576
    %23 = vst.msk [vmem:[#allocation5] sm:$0x1] %vm22, %v21
    // Predicated region
    $region10: #{tpu_custom_call.1} parent=1 // pred_check
      _
    $region11: #{tpu_custom_call.1} parent=1 // pred_check_branch
      %25 = sbr.rel (0) target = $region13
    $region12: #{tpu_custom_call.1} parent=1 // pred_region
      %s27 = ssub.s32 16, 16
      %28 = vsyncadd [#allocation4], %s27
      %s30 = sshll.u32 [#allocation5], 4
      %s31 = int_to_ptr.vmem [resolvable:$true] %s30
      %33 = dma.vmem_to_hbm [thread:$0]  %s31, 16, %s1, [#allocation4]
    $region13: #{tpu_custom_call.1} parent=1 // pred_fallthru
      _
    // Predicated region
    $region14: #{tpu_custom_call.1} parent=1 // pred_check
      _
    $region15: #{tpu_custom_call.1} parent=1 // pred_check_branch
      %35 = sbr.rel (0) target = $region17
    $region16: #{tpu_custom_call.1} parent=1 // pred_region
      %36 = dma.done [#allocation4], 16
    $region17: #{tpu_custom_call.1} parent=1 // pred_fallthru
      _
    %37 = vsyncpa [#allocation3], 1
    %38 = vsyncpa [#allocation4], 1

</llo_original>
